<compile_context>
chip_gen: v6e
topology: v6e:2x2x1
jax: 0.10.0
libtpu: 0.0.40
codegen_flags: <defaults>
</compile_context>

<pallas_src>
import math

import jax
import jax.numpy as jnp
from jax.experimental import pallas as pl
from jax.experimental.pallas import tpu as pltpu


def _double_q_kernel(
    state_ref, action_ref,                  # [bt, ni] f32, [bt, na] f32
    w1_ref, b1_ref,                         # [d_in, 2H] bf16, [1, 2H] f32
    w2a_ref, b2a_ref, w2b_ref, b2b_ref,     # [H, H] bf16 / [1, H] f32, per head
    w3_ref, b3_ref,                         # [2, H] f32, [1, 2] f32
    out_ref,                                # [bt, 2] f32 (q1 = col 0, q2 = col 1)
):
    hdim = w2a_ref.shape[0]

    # torch.cat([state, action], dim=-1) inside the kernel (lane concat of the
    # two activation tiles), then cast once to bf16 for the MXU.
    xu = jnp.concatenate([state_ref[...], action_ref[...]], axis=-1)
    xu = xu.astype(jnp.bfloat16)

    # Layer 1, BOTH heads in a single MXU pass: [bt, d_in] @ [d_in, 2H].
    h = jnp.dot(xu, w1_ref[...], preferred_element_type=jnp.float32) + b1_ref[...]
    h = jnp.maximum(h, 0.0).astype(jnp.bfloat16)          # ReLU (f32) -> bf16

    h1 = h[:, :hdim]                                       # q1 hidden
    h2 = h[:, hdim:]                                       # q2 hidden

    # Layer 2 per head (the dominant MXU work). ReLU outputs stay f32 — layer 3
    # no longer touches the MXU, so no further bf16 cast is needed.
    g1 = jnp.maximum(
        jnp.dot(h1, w2a_ref[...], preferred_element_type=jnp.float32) + b2a_ref[...],
        0.0,
    )
    g2 = jnp.maximum(
        jnp.dot(h2, w2b_ref[...], preferred_element_type=jnp.float32) + b2b_ref[...],
        0.0,
    )

    # Layer 3 on the VPU + XLU instead of wasting MXU N-tiles on 2 output lanes:
    # z_k = sum_j g_k[:, j] * w3[k, j] + b3[k].
    z1 = jnp.sum(g1 * w3_ref[0:1, :], axis=-1, keepdims=True) + b3_ref[:, 0:1]
    z2 = jnp.sum(g2 * w3_ref[1:2, :], axis=-1, keepdims=True) + b3_ref[:, 1:2]

    out_ref[:, 0:1] = jax.nn.sigmoid(z1)                   # EUP transcendental
    out_ref[:, 1:2] = jax.nn.sigmoid(z2)


def double_q_forward(state, action, params, *, batch_tile=1024):
    """Returns (q1, q2), each [B, 1] f32.  `params` is init_params()[0]."""
    state = state.astype(jnp.float32)
    action = action.astype(jnp.float32)

    B, num_inputs = state.shape
    num_actions = action.shape[1]
    hdim = params["w2a"].shape[0]
    d_in = num_inputs + num_actions

    # --- batch tiling --------------------------------------------------------
    # Ensure >= 2 grid steps whenever the batch is big enough, so the
    # dimension_semantics=("parallel",) axis can be sharded over both v7x
    # TensorCores (a no-op on single-TC v5e/v6e).
    min_tile = 8
    bt = min(batch_tile, B)
    if min_tile * 2 < B <= batch_tile:
        bt = ((B + 1) // 2 + min_tile - 1) // min_tile * min_tile
    bt = max(1, min(bt, B))
    pad = (-B) % bt
    if pad:
        state = jnp.pad(state, ((0, pad), (0, 0)))
        action = jnp.pad(action, ((0, pad), (0, 0)))
    Bp = B + pad
    grid = (Bp // bt,)

    operands = (
        state, action,
        params["w1"], params["b1"],
        params["w2a"], params["b2a"], params["w2b"], params["b2b"],
        params["w3"], params["b3"],
    )

    def row_spec(cols):
        # Batch-tiled activation blocks.
        return pl.BlockSpec((bt, cols), lambda i: (i, 0))

    def const_spec(arr):
        # Grid-invariant full-array blocks: weights stay VMEM-resident.
        nd = arr.ndim
        return pl.BlockSpec(arr.shape, lambda i, _nd=nd: (0,) * _nd)

    in_specs = [row_spec(num_inputs), row_spec(num_actions)] + [
        const_spec(op) for op in operands[2:]
    ]
    out_specs = pl.BlockSpec((bt, 2), lambda i: (i, 0))

    # --- cost estimate + explicit VMEM budget --------------------------------
    weight_bytes = sum(int(p.size) * p.dtype.itemsize for p in operands[2:])
    flops = 2 * Bp * (d_in * 2 * hdim + 2 * hdim * hdim + 2 * hdim)
    bytes_accessed = weight_bytes + Bp * (d_in + 2) * 4
    cost = pl.CostEstimate(
        flops=int(flops),
        transcendentals=int(2 * Bp),
        bytes_accessed=int(bytes_accessed),
    )

    act_bytes = 2 * 2 * bt * (d_in + 2) * 4                       # dbl-buffered I/O tiles
    inter_bytes = bt * (2 * hdim) * (4 + 2) + 2 * bt * hdim * 4 + bt * d_in * 2
    vmem_limit = int(
        min(max(2 * (2 * weight_bytes + act_bytes + inter_bytes), 32 << 20), 48 << 20)
    )

    out = pl.pallas_call(
        _double_q_kernel,
        out_shape=jax.ShapeDtypeStruct((Bp, 2), jnp.float32),
        grid=grid,
        in_specs=in_specs,
        out_specs=out_specs,
        compiler_params=pltpu.CompilerParams(
            dimension_semantics=("parallel",),
            vmem_limit_bytes=vmem_limit,
        ),
        cost_estimate=cost,
    )(*operands)

    q = out[:B]
    return q[:, 0:1], q[:, 1:2]


def _xavier_uniform(key, fan_in, fan_out, gain=1.0):
    # Matches torch.nn.init.xavier_uniform_ (gain * sqrt(6/(fan_in+fan_out))),
    # stored as [in, out] (transpose of torch's [out, in] layout).
    bound = gain * math.sqrt(6.0 / (fan_in + fan_out))
    return jax.random.uniform(
        key, (fan_in, fan_out), dtype=jnp.float32, minval=-bound, maxval=bound
    )


def init_params(key, num_inputs, num_actions, hidden_dim=256, weight_dtype=jnp.bfloat16):
    """Returns (packed_params_for_kernel, raw_f32_params_for_reference)."""
    d_in = num_inputs + num_actions
    keys = jax.random.split(key, 6)

    raw = {
        "q1_w1": _xavier_uniform(keys[0], d_in, hidden_dim),
        "q2_w1": _xavier_uniform(keys[1], d_in, hidden_dim),
        "q1_w2": _xavier_uniform(keys[2], hidden_dim, hidden_dim),
        "q2_w2": _xavier_uniform(keys[3], hidden_dim, hidden_dim),
        "q1_w3": _xavier_uniform(keys[4], hidden_dim, 1),
        "q2_w3": _xavier_uniform(keys[5], hidden_dim, 1),
        # torch.nn.init.constant_(bias, 0)
        "q1_b1": jnp.zeros((1, hidden_dim), jnp.float32),
        "q2_b1": jnp.zeros((1, hidden_dim), jnp.float32),
        "q1_b2": jnp.zeros((1, hidden_dim), jnp.float32),
        "q2_b2": jnp.zeros((1, hidden_dim), jnp.float32),
        "q1_b3": jnp.zeros((1, 1), jnp.float32),
        "q2_b3": jnp.zeros((1, 1), jnp.float32),
    }

    # --- pack for the fused kernel ---
    packed = {
        # Layer 1: both heads side by side, one [d_in, 2H] bf16 matrix.
        "w1": jnp.concatenate([raw["q1_w1"], raw["q2_w1"]], axis=1).astype(weight_dtype),
        "b1": jnp.concatenate([raw["q1_b1"], raw["q2_b1"]], axis=1),      # [1, 2H] f32
        # Layer 2: per head.
        "w2a": raw["q1_w2"].astype(weight_dtype),                         # [H, H]
        "b2a": raw["q1_b2"],                                              # [1, H] f32
        "w2b": raw["q2_w2"].astype(weight_dtype),                         # [H, H]
        "b2b": raw["q2_b2"],                                              # [1, H] f32
        # Layer 3: [2, H] f32 rows (row 0 = q1, row 1 = q2); used on the
        # VPU/XLU, so f32 and no zero-column padding.
        "w3": jnp.concatenate([raw["q1_w3"].T, raw["q2_w3"].T], axis=0),  # [2, H] f32
        "b3": jnp.concatenate([raw["q1_b3"], raw["q2_b3"]], axis=1),      # [1, 2] f32
    }
    return packed, raw


def _reference_forward(state, action, raw):
    """Pure-JAX f32 reference matching the PyTorch module exactly."""
    xu = jnp.concatenate([state, action], axis=-1)

    def head(w1, b1, w2, b2, w3, b3):
        h = jax.nn.relu(xu @ w1 + b1)
        h = jax.nn.relu(h @ w2 + b2)
        return jax.nn.sigmoid(h @ w3 + b3)

    q1 = head(raw["q1_w1"], raw["q1_b1"], raw["q1_w2"], raw["q1_b2"], raw["q1_w3"], raw["q1_b3"])
    q2 = head(raw["q2_w1"], raw["q2_b1"], raw["q2_w2"], raw["q2_b2"], raw["q2_w3"], raw["q2_b3"])
    return q1, q2


if __name__ == "__main__":
    key = jax.random.PRNGKey(0)
    k_state, k_action, k_params, k_state2, k_action2, k_params2, k_state3, k_action3 = (
        jax.random.split(key, 8)
    )

    # --- Test 1: small shapes (grid=1, non-lane-aligned hidden split path) ---
    B, num_inputs, num_actions, hidden_dim = 4, 16, 4, 32
    params, raw = init_params(k_params, num_inputs, num_actions, hidden_dim)
    state = jax.random.normal(k_state, (B, num_inputs), dtype=jnp.float32)
    action = jax.random.normal(k_action, (B, num_actions), dtype=jnp.float32)

    q1, q2 = double_q_forward(state, action, params)
    jax.block_until_ready((q1, q2))
    r1, r2 = _reference_forward(state, action, raw)
    assert q1.shape == (B, 1) and q2.shape == (B, 1)
    # bf16 weights -> loose tolerance against the f32 reference.
    assert jnp.allclose(q1, r1, atol=2e-2) and jnp.allclose(q2, r2, atol=2e-2)

    # --- Test 2: production hidden_dim=256, batch split into >=2 grid steps ---
    params2, raw2 = init_params(k_params2, num_inputs, num_actions, 256)
    B2 = 600
    state2 = jax.random.normal(k_state2, (B2, num_inputs), dtype=jnp.float32)
    action2 = jax.random.normal(k_action2, (B2, num_actions), dtype=jnp.float32)
    p1, p2 = double_q_forward(state2, action2, params2)       # grid=2, padded batch
    jax.block_until_ready((p1, p2))
    s1, s2 = _reference_forward(state2, action2, raw2)
    assert p1.shape == (B2, 1) and p2.shape == (B2, 1)
    assert jnp.allclose(p1, s1, atol=3e-2) and jnp.allclose(p2, s2, atol=3e-2)

    # --- Test 3: large batch, multi-tile path (batch_tile=1024, grid=3) ---
    B3 = 3000
    state3 = jax.random.normal(k_state3, (B3, num_inputs), dtype=jnp.float32)
    action3 = jax.random.normal(k_action3, (B3, num_actions), dtype=jnp.float32)
    t1, t2 = double_q_forward(state3, action3, params2, batch_tile=1024)
    jax.block_until_ready((t1, t2))
    u1, u2 = _reference_forward(state3, action3, raw2)
    assert t1.shape == (B3, 1) and t2.shape == (B3, 1)
    assert jnp.allclose(t1, u1, atol=3e-2) and jnp.allclose(t2, u2, atol=3e-2)

    print("KERNEL_OK")
</pallas_src>

<mosaic_0001>
module attributes {stable_mosaic.version = 11 : i64} {
  func.func @_double_q_kernel(%arg0: i32, %arg1: memref<4x16xf32, #tpu.memory_space<vmem>>, %arg2: memref<4x4xf32, #tpu.memory_space<vmem>>, %arg3: memref<20x64xbf16, #tpu.memory_space<vmem>>, %arg4: memref<1x64xf32, #tpu.memory_space<vmem>>, %arg5: memref<32x32xbf16, #tpu.memory_space<vmem>>, %arg6: memref<1x32xf32, #tpu.memory_space<vmem>>, %arg7: memref<32x32xbf16, #tpu.memory_space<vmem>>, %arg8: memref<1x32xf32, #tpu.memory_space<vmem>>, %arg9: memref<2x32xf32, #tpu.memory_space<vmem>>, %arg10: memref<1x2xf32, #tpu.memory_space<vmem>>, %arg11: memref<4x2xf32, #tpu.memory_space<vmem>>) attributes {dimension_semantics = [#tpu.dimension_semantics<parallel>], iteration_bounds = array<i64: 1>, scalar_prefetch = 0 : i64, scratch_operands = 0 : i64, tpu.core_type = #tpu.core_type<tc>, window_params = [{transform_indices = @transform_0, window_bounds = array<i64: 4, 16>}, {transform_indices = @transform_1, window_bounds = array<i64: 4, 4>}, {pipeline_mode = #tpu.pipeline_mode<synchronous>, transform_indices = @transform_2, window_bounds = array<i64: 20, 64>}, {pipeline_mode = #tpu.pipeline_mode<synchronous>, transform_indices = @transform_3, window_bounds = array<i64: 1, 64>}, {pipeline_mode = #tpu.pipeline_mode<synchronous>, transform_indices = @transform_4, window_bounds = array<i64: 32, 32>}, {pipeline_mode = #tpu.pipeline_mode<synchronous>, transform_indices = @transform_5, window_bounds = array<i64: 1, 32>}, {pipeline_mode = #tpu.pipeline_mode<synchronous>, transform_indices = @transform_6, window_bounds = array<i64: 32, 32>}, {pipeline_mode = #tpu.pipeline_mode<synchronous>, transform_indices = @transform_7, window_bounds = array<i64: 1, 32>}, {pipeline_mode = #tpu.pipeline_mode<synchronous>, transform_indices = @transform_8, window_bounds = array<i64: 2, 32>}, {pipeline_mode = #tpu.pipeline_mode<synchronous>, transform_indices = @transform_9, window_bounds = array<i64: 1, 2>}, {transform_indices = @transform_10, window_bounds = array<i64: 4, 2>}]} {
    %c0 = arith.constant 0 : index
    %c0_0 = arith.constant 0 : index
    %0 = vector.load %arg1[%c0, %c0_0] : memref<4x16xf32, #tpu.memory_space<vmem>>, vector<4x16xf32>
    %c0_1 = arith.constant 0 : index
    %c0_2 = arith.constant 0 : index
    %1 = vector.load %arg2[%c0_1, %c0_2] : memref<4x4xf32, #tpu.memory_space<vmem>>, vector<4x4xf32>
    %2 = tpu.concatenate %0, %1 in 1 : vector<4x16xf32>, vector<4x4xf32> -> vector<4x20xf32>
    %3 = arith.truncf %2 : vector<4x20xf32> to vector<4x20xbf16>
    %c0_3 = arith.constant 0 : index
    %c0_4 = arith.constant 0 : index
    %4 = vector.load %arg3[%c0_3, %c0_4] : memref<20x64xbf16, #tpu.memory_space<vmem>>, vector<20x64xbf16>
    %cst = arith.constant dense<0.000000e+00> : vector<4x64xf32>
    %5 = tpu.matmul %3, %4, %cst {dimension_numbers = #tpu.dot_dimension_numbers<[1], [0], [0], [1], [0, 0, 1, 1], [], []>} : vector<4x20xbf16>, vector<20x64xbf16>, vector<4x64xf32> -> vector<4x64xf32>
    %c0_5 = arith.constant 0 : index
    %c0_6 = arith.constant 0 : index
    %6 = vector.load %arg4[%c0_5, %c0_6] : memref<1x64xf32, #tpu.memory_space<vmem>>, vector<1x64xf32>
    %7 = vector.broadcast %6 : vector<1x64xf32> to vector<4x64xf32>
    %8 = arith.addf %5, %7 : vector<4x64xf32>
    %cst_7 = arith.constant 0.000000e+00 : f32
    %9 = vector.broadcast %cst_7 : f32 to vector<4x64xf32>
    %10 = arith.maximumf %8, %9 : vector<4x64xf32>
    %11 = arith.truncf %10 : vector<4x64xf32> to vector<4x64xbf16>
    %12 = vector.extract_strided_slice %11 {offsets = [0, 0], sizes = [4, 32], strides = [1, 1]} : vector<4x64xbf16> to vector<4x32xbf16>
    %13 = vector.extract_strided_slice %11 {offsets = [0, 32], sizes = [4, 32], strides = [1, 1]} : vector<4x64xbf16> to vector<4x32xbf16>
    %c0_8 = arith.constant 0 : index
    %c0_9 = arith.constant 0 : index
    %14 = vector.load %arg5[%c0_8, %c0_9] : memref<32x32xbf16, #tpu.memory_space<vmem>>, vector<32x32xbf16>
    %cst_10 = arith.constant dense<0.000000e+00> : vector<4x32xf32>
    %15 = tpu.matmul %12, %14, %cst_10 {dimension_numbers = #tpu.dot_dimension_numbers<[1], [0], [0], [1], [0, 0, 1, 1], [], []>} : vector<4x32xbf16>, vector<32x32xbf16>, vector<4x32xf32> -> vector<4x32xf32>
    %c0_11 = arith.constant 0 : index
    %c0_12 = arith.constant 0 : index
    %16 = vector.load %arg6[%c0_11, %c0_12] : memref<1x32xf32, #tpu.memory_space<vmem>>, vector<1x32xf32>
    %17 = vector.broadcast %16 : vector<1x32xf32> to vector<4x32xf32>
    %18 = arith.addf %15, %17 : vector<4x32xf32>
    %cst_13 = arith.constant 0.000000e+00 : f32
    %19 = vector.broadcast %cst_13 : f32 to vector<4x32xf32>
    %20 = arith.maximumf %18, %19 : vector<4x32xf32>
    %c0_14 = arith.constant 0 : index
    %c0_15 = arith.constant 0 : index
    %21 = vector.load %arg7[%c0_14, %c0_15] : memref<32x32xbf16, #tpu.memory_space<vmem>>, vector<32x32xbf16>
    %cst_16 = arith.constant dense<0.000000e+00> : vector<4x32xf32>
    %22 = tpu.matmul %13, %21, %cst_16 {dimension_numbers = #tpu.dot_dimension_numbers<[1], [0], [0], [1], [0, 0, 1, 1], [], []>} : vector<4x32xbf16>, vector<32x32xbf16>, vector<4x32xf32> -> vector<4x32xf32>
    %c0_17 = arith.constant 0 : index
    %c0_18 = arith.constant 0 : index
    %23 = vector.load %arg8[%c0_17, %c0_18] : memref<1x32xf32, #tpu.memory_space<vmem>>, vector<1x32xf32>
    %24 = vector.broadcast %23 : vector<1x32xf32> to vector<4x32xf32>
    %25 = arith.addf %22, %24 : vector<4x32xf32>
    %cst_19 = arith.constant 0.000000e+00 : f32
    %26 = vector.broadcast %cst_19 : f32 to vector<4x32xf32>
    %27 = arith.maximumf %25, %26 : vector<4x32xf32>
    %c0_20 = arith.constant 0 : index
    %c0_21 = arith.constant 0 : index
    %28 = vector.load %arg9[%c0_20, %c0_21] : memref<2x32xf32, #tpu.memory_space<vmem>>, vector<1x32xf32>
    %29 = vector.broadcast %28 : vector<1x32xf32> to vector<4x32xf32>
    %30 = arith.mulf %20, %29 : vector<4x32xf32>
    %cst_22 = arith.constant dense<0.000000e+00> : vector<4xf32>
    %31 = vector.multi_reduction <add>, %30, %cst_22 [1] : vector<4x32xf32> to vector<4xf32>
    %32 = vector.shape_cast %31 : vector<4xf32> to vector<4x1xf32>
    %c0_23 = arith.constant 0 : index
    %c0_24 = arith.constant 0 : index
    %33 = vector.load %arg10[%c0_23, %c0_24] : memref<1x2xf32, #tpu.memory_space<vmem>>, vector<1x1xf32>
    %34 = vector.broadcast %33 : vector<1x1xf32> to vector<4x1xf32>
    %35 = arith.addf %32, %34 : vector<4x1xf32>
    %c1 = arith.constant 1 : index
    %c0_25 = arith.constant 0 : index
    %36 = vector.load %arg9[%c1, %c0_25] : memref<2x32xf32, #tpu.memory_space<vmem>>, vector<1x32xf32>
    %37 = vector.broadcast %36 : vector<1x32xf32> to vector<4x32xf32>
    %38 = arith.mulf %27, %37 : vector<4x32xf32>
    %cst_26 = arith.constant dense<0.000000e+00> : vector<4xf32>
    %39 = vector.multi_reduction <add>, %38, %cst_26 [1] : vector<4x32xf32> to vector<4xf32>
    %40 = vector.shape_cast %39 : vector<4xf32> to vector<4x1xf32>
    %c0_27 = arith.constant 0 : index
    %c1_28 = arith.constant 1 : index
    %41 = vector.load %arg10[%c0_27, %c1_28] : memref<1x2xf32, #tpu.memory_space<vmem>>, vector<1x1xf32>
    %42 = vector.broadcast %41 : vector<1x1xf32> to vector<4x1xf32>
    %43 = arith.addf %40, %42 : vector<4x1xf32>
    %44 = arith.negf %35 : vector<4x1xf32>
    %45 = math.exp %44 : vector<4x1xf32>
    %cst_29 = arith.constant 1.000000e+00 : f32
    %46 = vector.broadcast %cst_29 : f32 to vector<4x1xf32>
    %47 = arith.addf %46, %45 : vector<4x1xf32>
    %48 = arith.divf %46, %47 : vector<4x1xf32>
    %c0_30 = arith.constant 0 : index
    %c0_31 = arith.constant 0 : index
    %49 = vector.load %arg11[%c0_30, %c0_31] : memref<4x2xf32, #tpu.memory_space<vmem>>, vector<4x1xf32>
    tpu.vector_store %arg11[%c0_30, %c0_31], %48 {strides = array<i32>} : memref<4x2xf32, #tpu.memory_space<vmem>>, vector<4x1xf32>,
    %50 = arith.negf %43 : vector<4x1xf32>
    %51 = math.exp %50 : vector<4x1xf32>
    %cst_32 = arith.constant 1.000000e+00 : f32
    %52 = vector.broadcast %cst_32 : f32 to vector<4x1xf32>
    %53 = arith.addf %52, %51 : vector<4x1xf32>
    %54 = arith.divf %52, %53 : vector<4x1xf32>
    %c0_33 = arith.constant 0 : index
    %c1_34 = arith.constant 1 : index
    %55 = vector.load %arg11[%c0_33, %c1_34] : memref<4x2xf32, #tpu.memory_space<vmem>>, vector<4x1xf32>
    tpu.vector_store %arg11[%c0_33, %c1_34], %54 {strides = array<i32>} : memref<4x2xf32, #tpu.memory_space<vmem>>, vector<4x1xf32>,
    return
  }
  func.func @transform_0(%arg0: i32) -> (i32, i32) {
    %c0_i32 = arith.constant 0 : i32
    %c0_i32_0 = arith.constant 0 : i32
    return %arg0, %c0_i32 : i32, i32
  }
  func.func @transform_1(%arg0: i32) -> (i32, i32) {
    %c0_i32 = arith.constant 0 : i32
    %c0_i32_0 = arith.constant 0 : i32
    return %arg0, %c0_i32 : i32, i32
  }
  func.func @transform_2(%arg0: i32) -> (i32, i32) {
    %c0_i32 = arith.constant 0 : i32
    %c0_i32_0 = arith.constant 0 : i32
    %c0_i32_1 = arith.constant 0 : i32
    return %c0_i32, %c0_i32_0 : i32, i32
  }
  func.func @transform_3(%arg0: i32) -> (i32, i32) {
    %c0_i32 = arith.constant 0 : i32
    %c0_i32_0 = arith.constant 0 : i32
    %c0_i32_1 = arith.constant 0 : i32
    return %c0_i32, %c0_i32_0 : i32, i32
  }
  func.func @transform_4(%arg0: i32) -> (i32, i32) {
    %c0_i32 = arith.constant 0 : i32
    %c0_i32_0 = arith.constant 0 : i32
    %c0_i32_1 = arith.constant 0 : i32
    return %c0_i32, %c0_i32_0 : i32, i32
  }
  func.func @transform_5(%arg0: i32) -> (i32, i32) {
    %c0_i32 = arith.constant 0 : i32
    %c0_i32_0 = arith.constant 0 : i32
    %c0_i32_1 = arith.constant 0 : i32
    return %c0_i32, %c0_i32_0 : i32, i32
  }
  func.func @transform_6(%arg0: i32) -> (i32, i32) {
    %c0_i32 = arith.constant 0 : i32
    %c0_i32_0 = arith.constant 0 : i32
    %c0_i32_1 = arith.constant 0 : i32
    return %c0_i32, %c0_i32_0 : i32, i32
  }
  func.func @transform_7(%arg0: i32) -> (i32, i32) {
    %c0_i32 = arith.constant 0 : i32
    %c0_i32_0 = arith.constant 0 : i32
    %c0_i32_1 = arith.constant 0 : i32
    return %c0_i32, %c0_i32_0 : i32, i32
  }
  func.func @transform_8(%arg0: i32) -> (i32, i32) {
    %c0_i32 = arith.constant 0 : i32
    %c0_i32_0 = arith.constant 0 : i32
    %c0_i32_1 = arith.constant 0 : i32
    return %c0_i32, %c0_i32_0 : i32, i32
  }
  func.func @transform_9(%arg0: i32) -> (i32, i32) {
    %c0_i32 = arith.constant 0 : i32
    %c0_i32_0 = arith.constant 0 : i32
    %c0_i32_1 = arith.constant 0 : i32
    return %c0_i32, %c0_i32_0 : i32, i32
  }
  func.func @transform_10(%arg0: i32) -> (i32, i32) {
    %c0_i32 = arith.constant 0 : i32
    %c0_i32_0 = arith.constant 0 : i32
    return %arg0, %c0_i32 : i32, i32
  }
}

</mosaic_0001>

<llo_original>
// kernel: tpu_custom_call.1
$region0: #{tpu_custom_call.1}
  #allocation0 [shape = 'u32[]', space=smem, size = 0x4, offset = 0x4, fixed_abs, tag = 'smem constant byte address 0x4 - core index']
  #allocation1 [shape = 'u32[144,128]{1,0:T(1,128)}', space=vmem, size = 0x12000, scoped, tag = 'internal scratch']
  %s0 = inlined_call_operand.hbm [shape: f32[4,16], index: 0, kind: input, shape index: {}]
  %s1 = inlined_call_operand.hbm [shape: f32[4,4], index: 1, kind: input, shape index: {}]
  %s2 = inlined_call_operand.hbm [shape: bf16[20,64], index: 2, kind: input, shape index: {}]
  %s3 = inlined_call_operand.vmem [shape: f32[1,64], index: 3, kind: input, shape index: {}]
  %s4 = inlined_call_operand.hbm [shape: bf16[32,32], index: 4, kind: input, shape index: {}]
  %s5 = inlined_call_operand.vmem [shape: f32[1,32], index: 5, kind: input, shape index: {}]
  %s6 = inlined_call_operand.hbm [shape: bf16[32,32], index: 6, kind: input, shape index: {}]
  %s7 = inlined_call_operand.vmem [shape: f32[1,32], index: 7, kind: input, shape index: {}]
  %s8 = inlined_call_operand.vmem [shape: f32[2,32], index: 8, kind: input, shape index: {}]
  %s9 = inlined_call_operand.vmem [shape: f32[1,2], index: 9, kind: input, shape index: {}]
  %s10 = inlined_call_operand.vmem [shape: f32[4,2], index: 10, kind: output, shape index: {}]
  %s11 = sld [smem:[#allocation0]]
  $region70: #{tpu_custom_call.1} parent=0
    _
  %s13 = ssub.s32 1, %s11
  %s14 = scalar_select 0, %s13, %s11
  $region1: #{tpu_custom_call.1} parent=0
    #allocation2 [shape = 'u8[2048]{0}', space=vmem, size = 0x800, scoped, tag = 'input window, operand 0, single buffered']
    #allocation3 [shape = 's32[1]{0}', space=sflag, size = 0x4, scoped, tag = 'scoped memory for tpu_custom_call.1']
    #allocation4 [shape = 'u8[2048]{0}', space=vmem, size = 0x800, scoped, tag = 'input window, operand 1, single buffered']
    #allocation5 [shape = 's32[1]{0}', space=sflag, size = 0x4, scoped, tag = 'scoped memory for tpu_custom_call.1']
    #allocation6 [shape = 'u8[6144]{0}', space=vmem, size = 0x1800, scoped, tag = 'input window, operand 2, single buffered']
    #allocation7 [shape = 'u8[8192]{0}', space=vmem, size = 0x2000, scoped, tag = 'input window, operand 4, single buffered']
    #allocation8 [shape = 's32[1]{0}', space=sflag, size = 0x4, scoped, tag = 'scoped memory for tpu_custom_call.1']
    #allocation9 [shape = 'u8[8192]{0}', space=vmem, size = 0x2000, scoped, tag = 'input window, operand 6, single buffered']
    %15 = vsyncpa [#allocation3], 0
    %16 = vsyncpa [#allocation5], 0
    %17 = vsyncpa [#allocation8], 0
    // Predicated region
    $region2: #{tpu_custom_call.1} parent=1 // pred_check
      _
    $region3: #{tpu_custom_call.1} parent=1 // pred_check_branch
      %19 = sbr.rel (0) target = $region5
    $region4: #{tpu_custom_call.1} parent=1 // pred_region
      %s21 = ssub.s32 64, 64
      %22 = vsyncadd [#allocation3], %s21
      %s24 = sshll.u32 [#allocation2], 4
      %s25 = int_to_ptr.vmem [resolvable:$true] %s24
      %27 = dma.hbm_to_vmem [thread:$0]  %s0, 64, %s25, [#allocation3]
    $region5: #{tpu_custom_call.1} parent=1 // pred_fallthru
      _
    // Predicated region
    $region6: #{tpu_custom_call.1} parent=1 // pred_check
      _
    $region7: #{tpu_custom_call.1} parent=1 // pred_check_branch
      %29 = sbr.rel (0) target = $region9
    $region8: #{tpu_custom_call.1} parent=1 // pred_region
      %s31 = ssub.s32 64, 64
      %32 = vsyncadd [#allocation5], %s31
      %s34 = sshll.u32 [#allocation4], 4
      %s35 = int_to_ptr.vmem [resolvable:$true] %s34
      %37 = dma.hbm_to_vmem [thread:$0]  %s1, 64, %s35, [#allocation5]
    $region9: #{tpu_custom_call.1} parent=1 // pred_fallthru
      _
    // Predicated region
    $region10: #{tpu_custom_call.1} parent=1 // pred_check
      _
    $region11: #{tpu_custom_call.1} parent=1 // pred_check_branch
      %39 = sbr.rel (0) target = $region13
    $region12: #{tpu_custom_call.1} parent=1 // pred_region
      %s41 = ssub.s32 192, 192
      %42 = vsyncadd [#allocation5], %s41
      %s43 = sshll.u32 [#allocation6], 4
      %s44 = int_to_ptr.vmem [resolvable:$true] %s43
      %49 = dma.hbm_to_vmem [thread:$0]  %s2, 192, %s44, [#allocation5], 64, 64, 4
    $region13: #{tpu_custom_call.1} parent=1 // pred_fallthru
      _
    // Predicated region
    $region14: #{tpu_custom_call.1} parent=1 // pred_check
      _
    $region15: #{tpu_custom_call.1} parent=1 // pred_check_branch
      %51 = sbr.rel (0) target = $region17
    $region16: #{tpu_custom_call.1} parent=1 // pred_region
      _
    $region17: #{tpu_custom_call.1} parent=1 // pred_fallthru
      _
    // Predicated region
    $region18: #{tpu_custom_call.1} parent=1 // pred_check
      _
    $region19: #{tpu_custom_call.1} parent=1 // pred_check_branch
      %53 = sbr.rel (0) target = $region21
    $region20: #{tpu_custom_call.1} parent=1 // pred_region
      %s55 = ssub.s32 256, 256
      %56 = vsyncadd [#allocation8], %s55
      %s57 = sshll.u32 [#allocation7], 4
      %s58 = int_to_ptr.vmem [resolvable:$true] %s57
      %63 = dma.hbm_to_vmem [thread:$0]  %s4, 256, %s58, [#allocation8], 64, 64, 4
    $region21: #{tpu_custom_call.1} parent=1 // pred_fallthru
      _
    // Predicated region
    $region22: #{tpu_custom_call.1} parent=1 // pred_check
      _
    $region23: #{tpu_custom_call.1} parent=1 // pred_check_branch
      %65 = sbr.rel (0) target = $region25
    $region24: #{tpu_custom_call.1} parent=1 // pred_region
      _
    $region25: #{tpu_custom_call.1} parent=1 // pred_fallthru
      _
    // Predicated region
    $region26: #{tpu_custom_call.1} parent=1 // pred_check
      _
    $region27: #{tpu_custom_call.1} parent=1 // pred_check_branch
      %67 = sbr.rel (0) target = $region29
    $region28: #{tpu_custom_call.1} parent=1 // pred_region
      %s69 = ssub.s32 256, 256
      %70 = vsyncadd [#allocation8], %s69
      %s71 = sshll.u32 [#allocation9], 4
      %s72 = int_to_ptr.vmem [resolvable:$true] %s71
      %77 = dma.hbm_to_vmem [thread:$0]  %s6, 256, %s72, [#allocation8], 64, 64, 4
    $region29: #{tpu_custom_call.1} parent=1 // pred_fallthru
      _
    // Predicated region
    $region30: #{tpu_custom_call.1} parent=1 // pred_check
      _
    $region31: #{tpu_custom_call.1} parent=1 // pred_check_branch
      %79 = sbr.rel (0) target = $region33
    $region32: #{tpu_custom_call.1} parent=1 // pred_region
      _
    $region33: #{tpu_custom_call.1} parent=1 // pred_fallthru
      _
    // Predicated region
    $region34: #{tpu_custom_call.1} parent=1 // pred_check
      _
    $region35: #{tpu_custom_call.1} parent=1 // pred_check_branch
      %81 = sbr.rel (0) target = $region37
    $region36: #{tpu_custom_call.1} parent=1 // pred_region
      _
    $region37: #{tpu_custom_call.1} parent=1 // pred_fallthru
      _
    // Predicated region
    $region38: #{tpu_custom_call.1} parent=1 // pred_check
      _
    $region39: #{tpu_custom_call.1} parent=1 // pred_check_branch
      %83 = sbr.rel (0) target = $region41
    $region40: #{tpu_custom_call.1} parent=1 // pred_region
      _
    $region41: #{tpu_custom_call.1} parent=1 // pred_fallthru
      _
    // Predicated region
    $region42: #{tpu_custom_call.1} parent=1 // pred_check
      _
    $region43: #{tpu_custom_call.1} parent=1 // pred_check_branch
      %85 = sbr.rel (0) target = $region45
    $region44: #{tpu_custom_call.1} parent=1 // pred_region
      %86 = dma.done [#allocation3], 64
    $region45: #{tpu_custom_call.1} parent=1 // pred_fallthru
      _
    // Predicated region
    $region46: #{tpu_custom_call.1} parent=1 // pred_check
      _
    $region47: #{tpu_custom_call.1} parent=1 // pred_check_branch
      %88 = sbr.rel (0) target = $region49
    $region48: #{tpu_custom_call.1} parent=1 // pred_region
      %89 = dma.done [#allocation5], 64
    $region49: #{tpu_custom_call.1} parent=1 // pred_fallthru
      _
    // Predicated region
    $region50: #{tpu_custom_call.1} parent=1 // pred_check
      _
    $region51: #{tpu_custom_call.1} parent=1 // pred_check_branch
      %91 = sbr.rel (0) target = $region53
    $region52: #{tpu_custom_call.1} parent=1 // pred_region
      %92 = dma.done [#allocation5], 192
    $region53: #{tpu_custom_call.1} parent=1 // pred_fallthru
      _
    // Predicated region
    $region54: #{tpu_custom_call.1} parent=1 // pred_check
      _
    $region55: #{tpu_custom_call.1} parent=1 // pred_check_branch
      %94 = sbr.rel (0) target = $region57
    $region56: #{tpu_custom_call.1} parent=1 // pred_region
      %95 = dma.done [#allocation8], 256
    $region57: #{tpu_custom_call.1} parent=1 // pred_fallthru
      _
    // Predicated region
    $region58: #{tpu_custom_call.1} parent=1 // pred_check
      _
    $region59: #{tpu_custom_call.1} parent=1 // pred_check_branch
      %97 = sbr.rel (0) target = $region61
    $region60: #{tpu_custom_call.1} parent=1 // pred_region
      %98 = dma.done [#allocation8], 256
    $region61: #{tpu_custom_call.1} parent=1 // pred_fallthru
      _
    %v100 = vld [vmem:[#allocation2] sm:$0xf]
    %v101 = vld [vmem:[#allocation4] sm:$0xf]
    %103 = vrot.lane.b32.xlu0 %v101, 16
    %v104 = vpop.permute.xlu0 %103
    %vm106 = vcmask 130048
    %v107 = vsel %vm106, %v100, %v104
    %v108 = vpack.c.bf16 %v107, %v107
    %v109 = vld [vmem:[#allocation6] sm:$0xf]
    %v110 = vld [vmem:[#allocation6 + $0x4] sm:$0xf]
    %v111 = vld [vmem:[#allocation6 + $0x8] sm:$0x3]
    %v112 = vld [vmem:[%s3] sm:$0x1]
    %v114 = vlaneseq
    %v115 = vshrl.u32 %v114, 7
    %v116 = vsub.s32 0, %v115
    %v117 = vrot.slane %v112, %v116
    %v122 = vunpack.c.l.b16 %v109
    %v123 = vunpack.c.l.b16 %v110
    %v124 = vunpack.c.l.b16 %v111
    %v125 = vpack.c.b16 %v123, %v122
    %v126 = vpack.c.b16 %v124, %v124
    %vm128 = vcmask 162816
    %v130 = vsel %vm128, %v108, 0
    %vm132 = vcmask 1041408
    %v134 = vsel %vm132, %v126, 0
    %136 = vmatprep.subr.bf16.mxu0 0
    %137 = vmatpush1.bf16.msra.mxu0 0
    %138 = vmatprep.subr.bf16.mxu0 0
    %139 = vmatpush1.bf16.msra.mxu0 0
    %140 = vmatprep.subr.bf16.mxu0 0
    %141 = vmatpush1.bf16.msra.mxu0 0
    %142 = vmatprep.subr.bf16.mxu0 0
    %143 = vmatpush1.bf16.msra.mxu0 0
    %144 = vmatprep.subr.bf16.mxu0 0
    %145 = vmatpush1.bf16.msra.mxu0 0
    %146 = vmatprep.subr.bf16.mxu0 0
    %147 = vmatpush1.bf16.msra.mxu0 0
    %148 = vmatprep.subr.bf16.mxu0 0
    %149 = vmatpush1.bf16.msra.mxu0 %v134
    %150 = vmatprep.subr.bf16.mxu0 0
    %151 = vmatpush1.bf16.msra.mxu0 %v125
    %152 = vmatprep.subr.bf16.mxu0 0
    %153 = vmatpush2.bf16.msra.mxu0 0
    %154 = vmatprep.subr.bf16.mxu0 0
    %155 = vmatpush2.bf16.msra.mxu0 0
    %156 = vmatprep.subr.bf16.mxu0 0
    %157 = vmatpush2.bf16.msra.mxu0 0
    %158 = vmatprep.subr.bf16.mxu0 0
    %159 = vmatpush2.bf16.msra.mxu0 0
    %160 = vmatprep.subr.bf16.mxu0 0
    %161 = vmatpush2.bf16.msra.mxu0 0
    %162 = vmatprep.subr.bf16.mxu0 0
    %163 = vmatpush2.bf16.msra.mxu0 0
    %164 = vmatprep.subr.bf16.mxu0 0
    %165 = vmatpush2.bf16.msra.mxu0 0
    %166 = vmatprep.subr.bf16.mxu0 0
    %167 = vmatpush2.bf16.msra.mxu0 0
    %168 = vmatprep.mubr.bf16.mxu0 0
    %169 = vmatmul.mubr.bf16.gmra.mxu0 %v130
    %v170 = vpop.f32.mrf.mxu0
    %v171 = vadd.f32 %v117, %v170
    %v172 = vpop.f32.mrf.mxu0
    %v173 = vpop.f32.mrf.mxu0
    %v174 = vpop.f32.mrf.mxu0
    %175 = vdwg.mxu0
    %v176 = vmax.f32 %v171, 0.0
    %v177 = vpack.c.bf16 %v176, %v176
    %v178 = vld [vmem:[#allocation7] sm:$0xf]
    %v179 = vld [vmem:[#allocation7 + $0x4] sm:$0xf]
    %v180 = vld [vmem:[#allocation7 + $0x8] sm:$0xf]
    %v181 = vld [vmem:[#allocation7 + $0xc] sm:$0xf]
    %v182 = vld [vmem:[%s5] sm:$0x1]
    %v184 = vlaneseq
    %v185 = vshrl.u32 %v184, 7
    %v186 = vsub.s32 0, %v185
    %v187 = vrot.slane %v182, %v186
    %v193 = vunpack.c.l.b16 %v178
    %v194 = vunpack.c.l.b16 %v179
    %v195 = vunpack.c.l.b16 %v180
    %v196 = vunpack.c.l.b16 %v181
    %v197 = vpack.c.b16 %v194, %v193
    %v198 = vpack.c.b16 %v196, %v195
    %vm201 = vcmask 261120
    %v203 = vsel %vm201, %v177, 0
    %205 = vmatprep.subr.bf16.mxu0 0
    %206 = vmatpush1.bf16.msra.mxu0 0
    %207 = vmatprep.subr.bf16.mxu0 0
    %208 = vmatpush1.bf16.msra.mxu0 0
    %209 = vmatprep.subr.bf16.mxu0 0
    %210 = vmatpush1.bf16.msra.mxu0 0
    %211 = vmatprep.subr.bf16.mxu0 0
    %212 = vmatpush1.bf16.msra.mxu0 0
    %213 = vmatprep.subr.bf16.mxu0 0
    %214 = vmatpush1.bf16.msra.mxu0 0
    %215 = vmatprep.subr.bf16.mxu0 0
    %216 = vmatpush1.bf16.msra.mxu0 0
    %217 = vmatprep.subr.bf16.mxu0 0
    %218 = vmatpush1.bf16.msra.mxu0 %v198
    %219 = vmatprep.subr.bf16.mxu0 0
    %220 = vmatpush1.bf16.msra.mxu0 %v197
    %221 = vmatprep.subr.bf16.mxu0 0
    %222 = vmatpush2.bf16.msra.mxu0 0
    %223 = vmatprep.subr.bf16.mxu0 0
    %224 = vmatpush2.bf16.msra.mxu0 0
    %225 = vmatprep.subr.bf16.mxu0 0
    %226 = vmatpush2.bf16.msra.mxu0 0
    %227 = vmatprep.subr.bf16.mxu0 0
    %228 = vmatpush2.bf16.msra.mxu0 0
    %229 = vmatprep.subr.bf16.mxu0 0
    %230 = vmatpush2.bf16.msra.mxu0 0
    %231 = vmatprep.subr.bf16.mxu0 0
    %232 = vmatpush2.bf16.msra.mxu0 0
    %233 = vmatprep.subr.bf16.mxu0 0
    %234 = vmatpush2.bf16.msra.mxu0 0
    %235 = vmatprep.subr.bf16.mxu0 0
    %236 = vmatpush2.bf16.msra.mxu0 0
    %237 = vmatprep.mubr.bf16.mxu0 0
    %238 = vmatmul.mubr.bf16.gmra.mxu0 %v203
    %v239 = vpop.f32.mrf.mxu0
    %v240 = vadd.f32 %v187, %v239
    %v241 = vpop.f32.mrf.mxu0
    %v242 = vpop.f32.mrf.mxu0
    %v243 = vpop.f32.mrf.mxu0
    %244 = vdwg.mxu0
    %v245 = vmax.f32 %v240, 0.0
    %v246 = vld [vmem:[#allocation9] sm:$0xf]
    %v247 = vld [vmem:[#allocation9 + $0x4] sm:$0xf]
    %v248 = vld [vmem:[#allocation9 + $0x8] sm:$0xf]
    %v249 = vld [vmem:[#allocation9 + $0xc] sm:$0xf]
    %v250 = vld [vmem:[%s7] sm:$0x1]
    %v252 = vlaneseq
    %v253 = vshrl.u32 %v252, 7
    %v254 = vsub.s32 0, %v253
    %v255 = vrot.slane %v250, %v254
    %258 = vrot.lane.b32.xlu0 %v177, 96
    %v259 = vpop.permute.xlu0 %258
    %v264 = vunpack.c.l.b16 %v246
    %v265 = vunpack.c.l.b16 %v247
    %v266 = vunpack.c.l.b16 %v248
    %v267 = vunpack.c.l.b16 %v249
    %v268 = vpack.c.b16 %v265, %v264
    %v269 = vpack.c.b16 %v267, %v266
    %v273 = vsel %vm201, %v259, 0
    %275 = vmatprep.subr.bf16.mxu0 0
    %276 = vmatpush1.bf16.msra.mxu0 0
    %277 = vmatprep.subr.bf16.mxu0 0
    %278 = vmatpush1.bf16.msra.mxu0 0
    %279 = vmatprep.subr.bf16.mxu0 0
    %280 = vmatpush1.bf16.msra.mxu0 0
    %281 = vmatprep.subr.bf16.mxu0 0
    %282 = vmatpush1.bf16.msra.mxu0 0
    %283 = vmatprep.subr.bf16.mxu0 0
    %284 = vmatpush1.bf16.msra.mxu0 0
    %285 = vmatprep.subr.bf16.mxu0 0
    %286 = vmatpush1.bf16.msra.mxu0 0
    %287 = vmatprep.subr.bf16.mxu0 0
    %288 = vmatpush1.bf16.msra.mxu0 %v269
    %289 = vmatprep.subr.bf16.mxu0 0
    %290 = vmatpush1.bf16.msra.mxu0 %v268
    %291 = vmatprep.subr.bf16.mxu0 0
    %292 = vmatpush2.bf16.msra.mxu0 0
    %293 = vmatprep.subr.bf16.mxu0 0
    %294 = vmatpush2.bf16.msra.mxu0 0
    %295 = vmatprep.subr.bf16.mxu0 0
    %296 = vmatpush2.bf16.msra.mxu0 0
    %297 = vmatprep.subr.bf16.mxu0 0
    %298 = vmatpush2.bf16.msra.mxu0 0
    %299 = vmatprep.subr.bf16.mxu0 0
    %300 = vmatpush2.bf16.msra.mxu0 0
    %301 = vmatprep.subr.bf16.mxu0 0
    %302 = vmatpush2.bf16.msra.mxu0 0
    %303 = vmatprep.subr.bf16.mxu0 0
    %304 = vmatpush2.bf16.msra.mxu0 0
    %305 = vmatprep.subr.bf16.mxu0 0
    %306 = vmatpush2.bf16.msra.mxu0 0
    %307 = vmatprep.mubr.bf16.mxu0 0
    %308 = vmatmul.mubr.bf16.gmra.mxu0 %v273
    %v309 = vpop.f32.mrf.mxu0
    %v310 = vadd.f32 %v255, %v309
    %v311 = vpop.f32.mrf.mxu0
    %v312 = vpop.f32.mrf.mxu0
    %v313 = vpop.f32.mrf.mxu0
    %314 = vdwg.mxu0
    %v315 = vmax.f32 %v310, 0.0
    %v316 = vld [vmem:[%s8] sm:$0x1]
    %v317 = vlaneseq
    %v318 = vshrl.u32 %v317, 7
    %v319 = vsub.s32 0, %v318
    %v320 = vrot.slane %v316, %v319
    %v321 = vmul.f32 %v245, %v320
    %vm322 = vcmask 257024
    %v323 = vsel %vm322, %v321, 0.0
    %324 = vadd.xlane.f32.xlu0 %v323
    %v325 = vpop.xlane.xlu0 %324
    %v326 = vld [vmem:[%s9] sm:$0x1]
    %v328 = vlaneseq
    %v329 = vshrl.u32 %v328, 7
    %v330 = vsub.s32 0, %v329
    %v331 = vrot.slane %v326, %v330
    %v333 = vadd.f32 %v325, %v331
    %v334 = vld [vmem:[%s8 + $0x1] sm:$0x1]
    %v335 = vlaneseq
    %v336 = vshrl.u32 %v335, 7
    %v337 = vsub.s32 0, %v336
    %v338 = vrot.slane %v334, %v337
    %v339 = vmul.f32 %v315, %v338
    %v340 = vsel %vm322, %v339, 0.0
    %341 = vadd.xlane.f32.xlu0 %v340
    %v342 = vpop.xlane.xlu0 %341
    %v343 = vadd.f32 %v342, %v331
    %v344 = vxor.u32 %v333, 2147483648
    %v345 = vmul.f32 %v344, 1.442695
    %v346 = vpow.pop %v345
    %v347 = vadd.f32 %v346, 1.0
    %v348 = vrcp.pop %v347
    %v349 = vmul.f32 1.0, %v348
    %vm350 = vcmask 3072
    %351 = vst.msk [vmem:[%s10] sm:$0xf] %vm350, %v349
    %v352 = vxor.u32 %v343, 2147483648
    %v353 = vmul.f32 %v352, 1.442695
    %v354 = vpow.pop %v353
    %v355 = vadd.f32 %v354, 1.0
    %v356 = vrcp.pop %v355
    %v357 = vmul.f32 1.0, %v356
    %vm358 = vcmask 11272
    %359 = vst.msk [vmem:[%s10] sm:$0xf] %vm358, %v357
    // Predicated region
    $region62: #{tpu_custom_call.1} parent=1 // pred_check
      _
    $region63: #{tpu_custom_call.1} parent=1 // pred_check_branch
      %361 = sbr.rel (0) target = $region65
    $region64: #{tpu_custom_call.1} parent=1 // pred_region
      _
    $region65: #{tpu_custom_call.1} parent=1 // pred_fallthru
      _
    // Predicated region
    $region66: #{tpu_custom_call.1} parent=1 // pred_check
      _
    $region67: #{tpu_custom_call.1} parent=1 // pred_check_branch
      %363 = sbr.rel (0) target = $region69
    $region68: #{tpu_custom_call.1} parent=1 // pred_region
      _
    $region69: #{tpu_custom_call.1} parent=1 // pred_fallthru
      _
    %364 = vsyncpa [#allocation3], 1
    %365 = vsyncpa [#allocation5], 1
    %366 = vsyncpa [#allocation8], 1

</llo_original>
